<compile_context>
chip_gen: v6e
topology: v6e:2x2x1
jax: 0.10.0
libtpu: 0.0.40
codegen_flags: <defaults>
</compile_context>

<pallas_src>
import functools

import jax
import jax.numpy as jnp
from jax import lax
from jax.experimental import pallas as pl
from jax.experimental.pallas import tpu as pltpu


def _round_up(x, m):
    return ((x + m - 1) // m) * m


def temporal_attention_kernel(x_ref, wqkv_ref, bqkv_ref, gamma_ref, o_ref, *, hqp):
    x = x_ref[...].astype(jnp.float32)            # (Bt, S, Hp)
    w = wqkv_ref[...]                             # (Hp, 2*Hqp + Hp)
    b = bqkv_ref[...]                             # (1, 2*Hqp + Hp)

    # Single fused QKV projection on the MXU (f32 accumulation).
    qkv = lax.dot_general(
        x, w,
        dimension_numbers=(((2,), (0,)), ((), ())),
        preferred_element_type=jnp.float32) + b   # (Bt, S, N)

    q = qkv[:, :, :hqp]                           # (Bt, S, Hqp)  (padded cols are 0)
    k = qkv[:, :, hqp:2 * hqp]                    # (Bt, S, Hqp)
    v = qkv[:, :, 2 * hqp:]                       # (Bt, S, Hp)

    # scores[b, i, j] = q[b, i, :] . k[b, j, :]  — contraction over the last dim of
    # both operands; no transpose of K is materialized.
    scores = lax.dot_general(
        q, k,
        dimension_numbers=(((2,), (2,)), ((0,), (0,))),
        preferred_element_type=jnp.float32)       # (Bt, S, S)

    # Numerically-stable softmax over the key axis; divide goes to the EUP.
    scores = scores - jnp.max(scores, axis=-1, keepdims=True)
    p = jnp.exp(scores)
    p = p * pl.reciprocal(jnp.sum(p, axis=-1, keepdims=True), approx=True)

    out = lax.dot_general(
        p, v,
        dimension_numbers=(((2,), (1,)), ((0,), (0,))),
        preferred_element_type=jnp.float32)       # (Bt, S, Hp)

    gamma = gamma_ref[0]                          # SMEM scalar
    o_ref[...] = (gamma * out + x).astype(o_ref.dtype)


def temporal_attention(x, wq, bq, wk, bk, wv, bv, gamma, *, block_b=None):
    """x: (B, S, H); wq/wk: (H, H//8); wv: (H, H); biases 1-D; gamma: (1,)."""
    B, S, H = x.shape
    Hq = wq.shape[1]
    Hp = _round_up(H, 128)     # lane-dense hidden dim
    Hqp = _round_up(Hq, 128)   # lane-aligned q/k chunk so in-kernel slices hit 128 boundaries
    N = 2 * Hqp + Hp

    # --- wrapper-side layout plumbing (zero padding keeps the math exact) ---
    xp = jnp.pad(x, ((0, 0), (0, 0), (0, Hp - H))) if Hp != H else x

    def pad_w(w, rows, cols):
        return jnp.pad(w, ((0, rows - w.shape[0]), (0, cols - w.shape[1])))

    def pad_b(b_, cols):
        bflat = jnp.reshape(b_, (-1,))
        return jnp.pad(bflat, (0, cols - bflat.shape[0]))

    wqkv = jnp.concatenate(
        [pad_w(wq, Hp, Hqp), pad_w(wk, Hp, Hqp), pad_w(wv, Hp, Hp)], axis=1)   # (Hp, N)
    bqkv = jnp.concatenate(
        [pad_b(bq, Hqp), pad_b(bk, Hqp), pad_b(bv, Hp)])[None, :]              # (1, N)
    gamma_s = jnp.reshape(gamma, (-1,))[:1].astype(jnp.float32)                # (1,) -> SMEM

    # --- pick batch packing: fill rows, but keep >= 2 grid steps for v7x megacore ---
    if block_b is None:
        block_b = 1
        for bt in range(1, B + 1):
            if B % bt == 0 and (B // bt >= 2 or B == 1) and bt * S <= 512:
                block_b = bt
    Bt = block_b

    kernel = functools.partial(temporal_attention_kernel, hqp=Hqp)

    out_p = pl.pallas_call(
        kernel,
        out_shape=jax.ShapeDtypeStruct((B, S, Hp), x.dtype),
        grid_spec=pltpu.PrefetchScalarGridSpec(
            num_scalar_prefetch=0,
            grid=(B // Bt,),
            in_specs=[
                pl.BlockSpec((Bt, S, Hp), lambda b: (b, 0, 0)),   # x tile (lane-dense)
                pl.BlockSpec((Hp, N), lambda b: (0, 0)),          # fused Wqkv (resident)
                pl.BlockSpec((1, N), lambda b: (0, 0)),           # fused bias
                pl.BlockSpec(memory_space=pltpu.MemorySpace.SMEM),  # gamma scalar
            ],
            out_specs=pl.BlockSpec((Bt, S, Hp), lambda b: (b, 0, 0)),
        ),
        compiler_params=pltpu.CompilerParams(
            dimension_semantics=("parallel",),
            vmem_limit_bytes=32 * 1024 * 1024,
        ),
    )(xp, wqkv, bqkv, gamma_s)

    return out_p[..., :H] if Hp != H else out_p


def reference(x, wq, bq, wk, bk, wv, bv, gamma):
    q = x @ wq + bq
    k = x @ wk + bk
    v = x @ wv + bv
    # Note: the PyTorch module applies NO 1/sqrt(d_k) scaling — matched here.
    a = jax.nn.softmax(jnp.einsum("bqd,bkd->bqk", q, k), axis=-1)
    out = jnp.einsum("bqk,bkh->bqh", a, v)
    return jnp.reshape(gamma, ())[None, None, None] * out + x


if __name__ == "__main__":
    key = jax.random.PRNGKey(0)
    B, S, H = 2, 8, 32
    Hq = H // 8

    ks = jax.random.split(key, 8)
    x = jax.random.normal(ks[0], (B, S, H), dtype=jnp.float32)

    # Deterministic parameter init (nn.Linear shapes, stored transposed: (in, out)).
    bound = 1.0 / jnp.sqrt(H)
    wq = jax.random.uniform(ks[1], (H, Hq), minval=-bound, maxval=bound, dtype=jnp.float32)
    bq = jax.random.uniform(ks[2], (Hq,), minval=-bound, maxval=bound, dtype=jnp.float32)
    wk = jax.random.uniform(ks[3], (H, Hq), minval=-bound, maxval=bound, dtype=jnp.float32)
    bk = jax.random.uniform(ks[4], (Hq,), minval=-bound, maxval=bound, dtype=jnp.float32)
    wv = jax.random.uniform(ks[5], (H, H), minval=-bound, maxval=bound, dtype=jnp.float32)
    bv = jax.random.uniform(ks[6], (H,), minval=-bound, maxval=bound, dtype=jnp.float32)
    # PyTorch init is gamma = 0; use a nonzero value so the attention path is exercised.
    gamma = jnp.full((1,), 0.5, dtype=jnp.float32)

    out = temporal_attention(x, wq, bq, wk, bk, wv, bv, gamma)
    out = jax.block_until_ready(out)

    ref = reference(x, wq, bq, wk, bk, wv, bv, gamma)
    assert out.shape == (B, S, H)
    err = float(jnp.max(jnp.abs(out - ref)))
    # Tolerance accounts for the approximate (EUP) reciprocal in the softmax.
    assert jnp.allclose(out, ref, atol=2e-3, rtol=2e-3), err

    print("KERNEL_OK")
</pallas_src>

<mosaic_0001>
module attributes {stable_mosaic.version = 11 : i64} {
  func.func @temporal_attention_kernel(%arg0: i32, %arg1: memref<1x8x128xf32, #tpu.memory_space<vmem>>, %arg2: memref<128x384xf32, #tpu.memory_space<vmem>>, %arg3: memref<1x384xf32, #tpu.memory_space<vmem>>, %arg4: memref<1xf32, #tpu.memory_space<smem>>, %arg5: memref<1x8x128xf32, #tpu.memory_space<vmem>>) attributes {dimension_semantics = [#tpu.dimension_semantics<parallel>], iteration_bounds = array<i64: 2>, scalar_prefetch = 0 : i64, scratch_operands = 0 : i64, tpu.core_type = #tpu.core_type<tc>, window_params = [{transform_indices = @transform_0, window_bounds = array<i64: 1, 8, 128>}, {pipeline_mode = #tpu.pipeline_mode<synchronous>, transform_indices = @transform_1, window_bounds = array<i64: 128, 384>}, {pipeline_mode = #tpu.pipeline_mode<synchronous>, transform_indices = @transform_2, window_bounds = array<i64: 1, 384>}, {transform_indices = @transform_3, window_bounds = array<i64: 1>}, {transform_indices = @transform_4, window_bounds = array<i64: 1, 8, 128>}]} {
    %c0 = arith.constant 0 : index
    %c0_0 = arith.constant 0 : index
    %c0_1 = arith.constant 0 : index
    %0 = vector.load %arg1[%c0, %c0_0, %c0_1] : memref<1x8x128xf32, #tpu.memory_space<vmem>>, vector<1x8x128xf32>
    %c0_2 = arith.constant 0 : index
    %c0_3 = arith.constant 0 : index
    %1 = vector.load %arg2[%c0_2, %c0_3] : memref<128x384xf32, #tpu.memory_space<vmem>>, vector<128x384xf32>
    %c0_4 = arith.constant 0 : index
    %c0_5 = arith.constant 0 : index
    %2 = vector.load %arg3[%c0_4, %c0_5] : memref<1x384xf32, #tpu.memory_space<vmem>>, vector<1x384xf32>
    %cst = arith.constant dense<0.000000e+00> : vector<1x8x384xf32>
    %3 = tpu.matmul %0, %1, %cst {dimension_numbers = #tpu.dot_dimension_numbers<[2], [0], [0, 1], [1], [0, 0, 0, 1, 1, 1], [], []>} : vector<1x8x128xf32>, vector<128x384xf32>, vector<1x8x384xf32> -> vector<1x8x384xf32>
    %4 = vector.shape_cast %2 : vector<1x384xf32> to vector<1x1x384xf32>
    %5 = vector.broadcast %4 : vector<1x1x384xf32> to vector<1x8x384xf32>
    %6 = arith.addf %3, %5 : vector<1x8x384xf32>
    %7 = vector.extract_strided_slice %6 {offsets = [0, 0, 0], sizes = [1, 8, 128], strides = [1, 1, 1]} : vector<1x8x384xf32> to vector<1x8x128xf32>
    %8 = vector.extract_strided_slice %6 {offsets = [0, 0, 128], sizes = [1, 8, 128], strides = [1, 1, 1]} : vector<1x8x384xf32> to vector<1x8x128xf32>
    %9 = vector.extract_strided_slice %6 {offsets = [0, 0, 256], sizes = [1, 8, 128], strides = [1, 1, 1]} : vector<1x8x384xf32> to vector<1x8x128xf32>
    %cst_6 = arith.constant dense<0.000000e+00> : vector<1x8x8xf32>
    %10 = tpu.matmul %7, %8, %cst_6 {dimension_numbers = #tpu.dot_dimension_numbers<[2], [2], [1], [1], [0, 0, 0, 1, 1, 1], [0], [0]>} : vector<1x8x128xf32>, vector<1x8x128xf32>, vector<1x8x8xf32> -> vector<1x8x8xf32>
    %cst_7 = arith.constant dense<0xFF800000> : vector<1x8xf32>
    %11 = vector.multi_reduction <maximumf>, %10, %cst_7 [2] : vector<1x8x8xf32> to vector<1x8xf32>
    %12 = vector.shape_cast %11 : vector<1x8xf32> to vector<1x8x1xf32>
    %13 = vector.broadcast %12 : vector<1x8x1xf32> to vector<1x8x8xf32>
    %14 = arith.subf %10, %13 : vector<1x8x8xf32>
    %15 = math.exp %14 : vector<1x8x8xf32>
    %cst_8 = arith.constant dense<0.000000e+00> : vector<1x8xf32>
    %16 = vector.multi_reduction <add>, %15, %cst_8 [2] : vector<1x8x8xf32> to vector<1x8xf32>
    %17 = vector.shape_cast %16 : vector<1x8xf32> to vector<1x8x1xf32>
    %18 = tpu.reciprocal %17 {approx = true} : vector<1x8x1xf32> -> vector<1x8x1xf32>
    %19 = vector.broadcast %18 : vector<1x8x1xf32> to vector<1x8x8xf32>
    %20 = arith.mulf %15, %19 : vector<1x8x8xf32>
    %cst_9 = arith.constant dense<0.000000e+00> : vector<1x8x128xf32>
    %21 = tpu.matmul %20, %9, %cst_9 {dimension_numbers = #tpu.dot_dimension_numbers<[2], [1], [1], [2], [0, 0, 0, 1, 1, 2], [0], [0]>} : vector<1x8x8xf32>, vector<1x8x128xf32>, vector<1x8x128xf32> -> vector<1x8x128xf32>
    %c0_10 = arith.constant 0 : index
    %22 = memref.load %arg4[%c0_10] : memref<1xf32, #tpu.memory_space<smem>>
    %23 = vector.broadcast %22 : f32 to vector<1x8x128xf32>
    %24 = arith.mulf %23, %21 : vector<1x8x128xf32>
    %25 = arith.addf %24, %0 : vector<1x8x128xf32>
    %c0_11 = arith.constant 0 : index
    %c0_12 = arith.constant 0 : index
    %c0_13 = arith.constant 0 : index
    %26 = vector.load %arg5[%c0_11, %c0_12, %c0_13] : memref<1x8x128xf32, #tpu.memory_space<vmem>>, vector<1x8x128xf32>
    tpu.vector_store %arg5[%c0_11, %c0_12, %c0_13], %25 {strides = array<i32>} : memref<1x8x128xf32, #tpu.memory_space<vmem>>, vector<1x8x128xf32>,
    return
  }
  func.func @transform_0(%arg0: i32) -> (i32, i32, i32) {
    %c0_i32 = arith.constant 0 : i32
    %c0_i32_0 = arith.constant 0 : i32
    %c0_i32_1 = arith.constant 0 : i32
    return %arg0, %c0_i32, %c0_i32_0 : i32, i32, i32
  }
  func.func @transform_1(%arg0: i32) -> (i32, i32) {
    %c0_i32 = arith.constant 0 : i32
    %c0_i32_0 = arith.constant 0 : i32
    %c0_i32_1 = arith.constant 0 : i32
    return %c0_i32, %c0_i32_0 : i32, i32
  }
  func.func @transform_2(%arg0: i32) -> (i32, i32) {
    %c0_i32 = arith.constant 0 : i32
    %c0_i32_0 = arith.constant 0 : i32
    %c0_i32_1 = arith.constant 0 : i32
    return %c0_i32, %c0_i32_0 : i32, i32
  }
  func.func @transform_3(%arg0: i32) -> i32 {
    %c0_i32 = arith.constant 0 : i32
    %c0_i32_0 = arith.constant 0 : i32
    return %c0_i32 : i32
  }
  func.func @transform_4(%arg0: i32) -> (i32, i32, i32) {
    %c0_i32 = arith.constant 0 : i32
    %c0_i32_0 = arith.constant 0 : i32
    %c0_i32_1 = arith.constant 0 : i32
    return %arg0, %c0_i32, %c0_i32_0 : i32, i32, i32
  }
}

</mosaic_0001>

<llo_original>
// kernel: tpu_custom_call.1
$region0: #{tpu_custom_call.1}
  #allocation0 [shape = 'u32[]', space=smem, size = 0x4, offset = 0x4, fixed_abs, tag = 'smem constant byte address 0x4 - core index']
  #allocation1 [shape = 'u32[144,128]{1,0:T(1,128)}', space=vmem, size = 0x12000, scoped, tag = 'internal scratch']
  #allocation2 [shape = 'f32[1]{0:T(128)S(6)}', space=smem, size = 0x200, scoped, tag = 'scoped memory for tpu_custom_call.1']
  %s0 = inlined_call_operand.hbm [shape: f32[2,8,128], index: 0, kind: input, shape index: {}]
  %s1 = inlined_call_operand.hbm [shape: f32[128,384], index: 1, kind: input, shape index: {}]
  %s2 = inlined_call_operand.vmem [shape: f32[1,384], index: 2, kind: input, shape index: {}]
  %s3 = inlined_call_operand.<no memory space> [shape: f32[1], index: 3, kind: input, shape index: {}]
  %s4 = inlined_call_operand.hbm [shape: f32[2,8,128], index: 4, kind: output, shape index: {}]
  %s5 = sld [smem:[#allocation0]]
  $region57: #{tpu_custom_call.1} parent=0
    _
  %s7 = ssub.s32 1, %s5
  %s8 = scalar_select 0, %s7, %s5
  %9 = sst [smem:[#allocation2]] %s3
  $region1: #{tpu_custom_call.1} parent=0
    #allocation3 [shape = 'u8[8192]{0}', space=vmem, size = 0x2000, scoped, tag = 'input window, operand 0']
    #allocation4 [shape = 's32[2]{0}', space=sflag, size = 0x8, scoped, tag = 'scoped memory for tpu_custom_call.1']
    #allocation5 [shape = 's32[2]{0}', space=sflag, size = 0x8, scoped, tag = 'scoped memory for tpu_custom_call.1']
    #allocation6 [shape = 'u8[196608]{0}', space=vmem, size = 0x30000, scoped, tag = 'input window, operand 1, single buffered']
    #allocation7 [shape = 's32[1]{0}', space=sflag, size = 0x4, scoped, tag = 'scoped memory for tpu_custom_call.1']
    #allocation8 [shape = 'u8[8192]{0}', space=vmem, size = 0x2000, scoped, tag = 'output window, operand 0']
    %10 = vsyncpa [#allocation4], 0
    %s11 = scalar_lea.sflag [#allocation4], 1
    %12 = vsyncpa %s11, 0
    %13 = vsyncpa [#allocation7], 0
    %14 = vsyncpa [#allocation5], 0
    %s15 = scalar_lea.sflag [#allocation5], 1
    %16 = vsyncpa %s15, 0
    loop: start=0, step=1, limit=4
    $region2: #{tpu_custom_call.1} parent=1 // loop_pre_header
      _
    $region3: #{tpu_custom_call.1} parent=1 // loop_header
      %s18 = sphi 0, %s22
      %p19 = scmp.ge.s32.totalorder %s18, 4
      %s28 = sphi 0, %s30
      %s31 = sphi 0, %s28
      %s32 = sphi 0, %s31
      %s48 = sphi 0, %s32
      %s52 = sphi 0, %s52
      %s54 = sphi 0, %s52
      %s55 = sphi 0, %s54
      %s69 = sphi 0, %s55
      %s73 = sphi 0, %s73
      %s75 = sphi 0, %s73
      %s76 = sphi 0, %s75
      %s90 = sphi 0, %s76
      %s94 = sphi 0, %s94
      %s96 = sphi 0, %s94
      %s97 = sphi 0, %s96
      %s111 = sphi 0, %s97
      %s117 = sphi 0, %s119
      %s120 = sphi 0, %s117
      %s121 = sphi 0, %s120
      %s137 = sphi 0, %s121
    $region4: #{tpu_custom_call.1} parent=1 // loop_header_branch
      %21 = sbr.rel (%p19) target = $region8
    $region5: #{tpu_custom_call.1} parent=1 // loop_body
      %s23 = ssub.s32 %s18, 1
      %s24 = ssub.s32 %s18, 2
      %s25 = sadd.s32 %s18, 1
      %s26 = ssub.s32 %s18, %s25
      %p27 = scmp.eq.s32.totalorder %s26, 0
      %s29 = sadd.s32 %s28, 1
      %s30 = scalar_select %p27, %s28, %s29
      %p33 = pneg %p27
      %p34 = scmp.eq.s32.totalorder %s18, 1
      %p35 = por %p33, %p34
      %p36 = scmp.ne.s32.totalorder %s28, %s31
      %p37 = scmp.eq.s32.totalorder %s18, 0
      %p38 = por %p36, %p37
      %p39 = scmp.ne.s32.totalorder %s28, %s31
      %p40 = scmp.eq.s32.totalorder %s23, 1
      %p41 = por %p39, %p40
      %p42 = scmp.ne.s32.totalorder %s31, %s32
      %p43 = scmp.eq.s32.totalorder %s23, 0
      %p44 = por %p42, %p43
      %p45 = scmp.ne.s32.totalorder %s31, %s32
      %p46 = scmp.eq.s32.totalorder %s24, 1
      %p47 = por %p45, %p46
      %p49 = scmp.ne.s32.totalorder %s32, %s48
      %p50 = scmp.eq.s32.totalorder %s24, 0
      %p51 = por %p49, %p50
      %s53 = sadd.s32 %s52, 1
      %p56 = scmp.eq.s32.totalorder %s18, 1
      %p57 = scmp.ne.s32.totalorder %s52, %s54
      %p58 = scmp.eq.s32.totalorder %s18, 0
      %p59 = por %p57, %p58
      %p60 = scmp.ne.s32.totalorder %s52, %s54
      %p61 = scmp.eq.s32.totalorder %s23, 1
      %p62 = por %p60, %p61
      %p63 = scmp.ne.s32.totalorder %s54, %s55
      %p64 = scmp.eq.s32.totalorder %s23, 0
      %p65 = por %p63, %p64
      %p66 = scmp.ne.s32.totalorder %s54, %s55
      %p67 = scmp.eq.s32.totalorder %s24, 1
      %p68 = por %p66, %p67
      %p70 = scmp.ne.s32.totalorder %s55, %s69
      %p71 = scmp.eq.s32.totalorder %s24, 0
      %p72 = por %p70, %p71
      %s74 = sadd.s32 %s73, 1
      %p77 = scmp.eq.s32.totalorder %s18, 1
      %p78 = scmp.ne.s32.totalorder %s73, %s75
      %p79 = scmp.eq.s32.totalorder %s18, 0
      %p80 = por %p78, %p79
      %p81 = scmp.ne.s32.totalorder %s73, %s75
      %p82 = scmp.eq.s32.totalorder %s23, 1
      %p83 = por %p81, %p82
      %p84 = scmp.ne.s32.totalorder %s75, %s76
      %p85 = scmp.eq.s32.totalorder %s23, 0
      %p86 = por %p84, %p85
      %p87 = scmp.ne.s32.totalorder %s75, %s76
      %p88 = scmp.eq.s32.totalorder %s24, 1
      %p89 = por %p87, %p88
      %p91 = scmp.ne.s32.totalorder %s76, %s90
      %p92 = scmp.eq.s32.totalorder %s24, 0
      %p93 = por %p91, %p92
      %s95 = sadd.s32 %s94, 1
      %p98 = scmp.eq.s32.totalorder %s18, 1
      %p99 = scmp.ne.s32.totalorder %s94, %s96
      %p100 = scmp.eq.s32.totalorder %s18, 0
      %p101 = por %p99, %p100
      %p102 = scmp.ne.s32.totalorder %s94, %s96
      %p103 = scmp.eq.s32.totalorder %s23, 1
      %p104 = por %p102, %p103
      %p105 = scmp.ne.s32.totalorder %s96, %s97
      %p106 = scmp.eq.s32.totalorder %s23, 0
      %p107 = por %p105, %p106
      %p108 = scmp.ne.s32.totalorder %s96, %s97
      %p109 = scmp.eq.s32.totalorder %s24, 1
      %p110 = por %p108, %p109
      %p112 = scmp.ne.s32.totalorder %s97, %s111
      %p113 = scmp.eq.s32.totalorder %s24, 0
      %p114 = por %p112, %p113
      %s115 = ssub.s32 %s18, %s25
      %p116 = scmp.eq.s32.totalorder %s115, 0
      %s118 = sadd.s32 %s117, 1
      %s119 = scalar_select %p116, %s117, %s118
      %p122 = pneg %p116
      %p123 = scmp.eq.s32.totalorder %s18, 1
      %p124 = por %p122, %p123
      %p125 = scmp.ne.s32.totalorder %s117, %s120
      %p126 = scmp.eq.s32.totalorder %s18, 0
      %p127 = por %p125, %p126
      %p128 = scmp.ne.s32.totalorder %s117, %s120
      %p129 = scmp.eq.s32.totalorder %s23, 1
      %p130 = por %p128, %p129
      %p131 = scmp.ne.s32.totalorder %s120, %s121
      %p132 = scmp.eq.s32.totalorder %s23, 0
      %p133 = por %p131, %p132
      %p134 = scmp.ne.s32.totalorder %s120, %s121
      %p135 = scmp.eq.s32.totalorder %s24, 1
      %p136 = por %p134, %p135
      %p138 = scmp.ne.s32.totalorder %s121, %s137
      %p139 = scmp.eq.s32.totalorder %s24, 0
      %p140 = por %p138, %p139
      %p141 = scmp.le.s32.totalorder 1, %s18
      %p142 = scmp.lt.s32.totalorder %s18, 3
      %p143 = pnand %p141, %p142
      %p144 = pneg %p143
      // Predicated region
      $region9: #{tpu_custom_call.1} parent=5 // pred_check
        _
      $region10: #{tpu_custom_call.1} parent=5 // pred_check_branch
        %146 = sbr.rel (%p143) target = $region12
      $region11: #{tpu_custom_call.1} parent=5 // pred_region
        %s147 = ssub.s32 %s18, 1
        // Predicated region
        $region13: #{tpu_custom_call.1} parent=11 // pred_check
          %p148 = pneg %p65
        $region14: #{tpu_custom_call.1} parent=11 // pred_check_branch
          %150 = sbr.rel (%p148) target = $region16
        $region15: #{tpu_custom_call.1} parent=11 // pred_region
          %s152 = ssub.s32 6144, 6144
          %153 = vsyncadd [#allocation7], %s152
          %s154 = sshll.u32 [#allocation6], 4
          %s155 = int_to_ptr.vmem [resolvable:$true] %s154
          %160 = dma.hbm_to_vmem [thread:$0]  %s1, 6144, %s155, [#allocation7], 384, 384, 24
        $region16: #{tpu_custom_call.1} parent=11 // pred_fallthru
          _
        // Predicated region
        $region17: #{tpu_custom_call.1} parent=11 // pred_check
          %p161 = pneg %p86
        $region18: #{tpu_custom_call.1} parent=11 // pred_check_branch
          %163 = sbr.rel (%p161) target = $region20
        $region19: #{tpu_custom_call.1} parent=11 // pred_region
          _
        $region20: #{tpu_custom_call.1} parent=11 // pred_fallthru
          _
        // Predicated region
        $region21: #{tpu_custom_call.1} parent=11 // pred_check
          %p164 = pneg %p107
        $region22: #{tpu_custom_call.1} parent=11 // pred_check_branch
          %166 = sbr.rel (%p164) target = $region24
        $region23: #{tpu_custom_call.1} parent=11 // pred_region
          _
        $region24: #{tpu_custom_call.1} parent=11 // pred_fallthru
          _
      $region12: #{tpu_custom_call.1} parent=5 // pred_fallthru
        _
      %p167 = scmp.lt.s32.totalorder %s18, 2
      // Predicated region
      $region25: #{tpu_custom_call.1} parent=5 // pred_check
        %p168 = pneg %p167
      $region26: #{tpu_custom_call.1} parent=5 // pred_check_branch
        %170 = sbr.rel (%p168) target = $region28
      $region27: #{tpu_custom_call.1} parent=5 // pred_region
        // Predicated region
        $region29: #{tpu_custom_call.1} parent=27 // pred_check
          %p171 = pneg %p38
        $region30: #{tpu_custom_call.1} parent=27 // pred_check_branch
          %173 = sbr.rel (%p171) target = $region32
        $region31: #{tpu_custom_call.1} parent=27 // pred_region
          %s174 = sand.u32 %s28, 1
          %s175 = scalar_lea.sflag [#allocation4], %s174
          %s176 = sand.u32 %s28, 1
          %s177 = smul.addr %s176, 8
          %s178 = scalar_lea.vmem [#allocation3], %s177
          %s180 = ssub.s32 128, 128
          %181 = vsyncadd %s175, %s180
          %s182 = smul.addr %s18, 128
          %s183 = scalar_lea.hbm %s0, %s182
          %s185 = sshll.u32 %s178, 4
          %s186 = int_to_ptr.vmem [resolvable:$true] %s185
          %188 = dma.hbm_to_vmem [thread:$0]  %s183, 128, %s186, %s175
        $region32: #{tpu_custom_call.1} parent=27 // pred_fallthru
          _
      $region28: #{tpu_custom_call.1} parent=5 // pred_fallthru
        _
      %p189 = scmp.le.s32.totalorder 1, %s18
      %p190 = scmp.lt.s32.totalorder %s18, 3
      %p191 = pnand %p189, %p190
      %p192 = pneg %p191
      // Predicated region
      $region33: #{tpu_custom_call.1} parent=5 // pred_check
        _
      $region34: #{tpu_custom_call.1} parent=5 // pred_check_branch
        %194 = sbr.rel (%p191) target = $region36
      $region35: #{tpu_custom_call.1} parent=5 // pred_region
        %s195 = ssub.s32 %s18, 1
        %s196 = sand.u32 %s31, 1
        %s197 = scalar_lea.sflag [#allocation4], %s196
        %s198 = sand.u32 %s31, 1
        %s199 = smul.addr %s198, 8
        %s200 = scalar_lea.vmem [#allocation3], %s199
        // Predicated region
        $region37: #{tpu_custom_call.1} parent=35 // pred_check
          %p201 = pneg %p44
        $region38: #{tpu_custom_call.1} parent=35 // pred_check_branch
          %203 = sbr.rel (%p201) target = $region40
        $region39: #{tpu_custom_call.1} parent=35 // pred_region
          %204 = dma.done %s197, 128
        $region40: #{tpu_custom_call.1} parent=35 // pred_fallthru
          _
        // Predicated region
        $region41: #{tpu_custom_call.1} parent=35 // pred_check
          %p205 = pneg %p65
        $region42: #{tpu_custom_call.1} parent=35 // pred_check_branch
          %207 = sbr.rel (%p205) target = $region44
        $region43: #{tpu_custom_call.1} parent=35 // pred_region
          %208 = dma.done [#allocation7], 6144
        $region44: #{tpu_custom_call.1} parent=35 // pred_fallthru
          _
        %s209 = sand.u32 %s31, 1
        %s210 = scalar_lea.sflag [#allocation4], %s209
        %s211 = sand.u32 %s31, 1
        %s212 = smul.addr %s211, 8
        %s213 = scalar_lea.vmem [#allocation3], %s212
        %p214 = pneg %p44
        %p215 = pneg %p41
        %p216 = pneg %p65
        %p217 = pneg %p62
        %p218 = pneg %p86
        %p219 = pneg %p83
        %p220 = pneg %p107
        %p221 = pneg %p104
        %p222 = pneg %p133
        %p223 = pneg %p130
        %s224 = sand.u32 %s120, 1
        %s225 = scalar_lea.sflag [#allocation5], %s224
        %s226 = sand.u32 %s120, 1
        %s227 = smul.addr %s226, 8
        %s228 = scalar_lea.vmem [#allocation8], %s227
        %v229 = vld [vmem:[%s200] sm:$0xff]
        %v230 = vld [vmem:[#allocation6] sm:$0xff]
        %v231 = vld [vmem:[#allocation6 + $0x8] sm:$0xff]
        %v232 = vld [vmem:[#allocation6 + $0x10] sm:$0xff]
        %v233 = vld [vmem:[#allocation6 + $0x18] sm:$0xff]
        %v234 = vld [vmem:[#allocation6 + $0x20] sm:$0xff]
        %v235 = vld [vmem:[#allocation6 + $0x28] sm:$0xff]
        %v236 = vld [vmem:[#allocation6 + $0x30] sm:$0xff]
        %v237 = vld [vmem:[#allocation6 + $0x38] sm:$0xff]
        %v238 = vld [vmem:[#allocation6 + $0x40] sm:$0xff]
        %v239 = vld [vmem:[#allocation6 + $0x48] sm:$0xff]
        %v240 = vld [vmem:[#allocation6 + $0x50] sm:$0xff]
        %v241 = vld [vmem:[#allocation6 + $0x58] sm:$0xff]
        %v242 = vld [vmem:[#allocation6 + $0x60] sm:$0xff]
        %v243 = vld [vmem:[#allocation6 + $0x68] sm:$0xff]
        %v244 = vld [vmem:[#allocation6 + $0x70] sm:$0xff]
        %v245 = vld [vmem:[#allocation6 + $0x78] sm:$0xff]
        %v246 = vld [vmem:[#allocation6 + $0x80] sm:$0xff]
        %v247 = vld [vmem:[#allocation6 + $0x88] sm:$0xff]
        %v248 = vld [vmem:[#allocation6 + $0x90] sm:$0xff]
        %v249 = vld [vmem:[#allocation6 + $0x98] sm:$0xff]
        %v250 = vld [vmem:[#allocation6 + $0xa0] sm:$0xff]
        %v251 = vld [vmem:[#allocation6 + $0xa8] sm:$0xff]
        %v252 = vld [vmem:[#allocation6 + $0xb0] sm:$0xff]
        %v253 = vld [vmem:[#allocation6 + $0xb8] sm:$0xff]
        %v254 = vld [vmem:[#allocation6 + $0xc0] sm:$0xff]
        %v255 = vld [vmem:[#allocation6 + $0xc8] sm:$0xff]
        %v256 = vld [vmem:[#allocation6 + $0xd0] sm:$0xff]
        %v257 = vld [vmem:[#allocation6 + $0xd8] sm:$0xff]
        %v258 = vld [vmem:[#allocation6 + $0xe0] sm:$0xff]
        %v259 = vld [vmem:[#allocation6 + $0xe8] sm:$0xff]
        %v260 = vld [vmem:[#allocation6 + $0xf0] sm:$0xff]
        %v261 = vld [vmem:[#allocation6 + $0xf8] sm:$0xff]
        %v262 = vld [vmem:[#allocation6 + $0x100] sm:$0xff]
        %v263 = vld [vmem:[#allocation6 + $0x108] sm:$0xff]
        %v264 = vld [vmem:[#allocation6 + $0x110] sm:$0xff]
        %v265 = vld [vmem:[#allocation6 + $0x118] sm:$0xff]
        %v266 = vld [vmem:[#allocation6 + $0x120] sm:$0xff]
        %v267 = vld [vmem:[#allocation6 + $0x128] sm:$0xff]
        %v268 = vld [vmem:[#allocation6 + $0x130] sm:$0xff]
        %v269 = vld [vmem:[#allocation6 + $0x138] sm:$0xff]
        %v270 = vld [vmem:[#allocation6 + $0x140] sm:$0xff]
        %v271 = vld [vmem:[#allocation6 + $0x148] sm:$0xff]
        %v272 = vld [vmem:[#allocation6 + $0x150] sm:$0xff]
        %v273 = vld [vmem:[#allocation6 + $0x158] sm:$0xff]
        %v274 = vld [vmem:[#allocation6 + $0x160] sm:$0xff]
        %v275 = vld [vmem:[#allocation6 + $0x168] sm:$0xff]
        %v276 = vld [vmem:[#allocation6 + $0x170] sm:$0xff]
        %v277 = vld [vmem:[#allocation6 + $0x178] sm:$0xff]
        %v278 = vld [vmem:[%s2] sm:$0x7]
        %v280 = vlaneseq
        %v281 = vshrl.u32 %v280, 7
        %v282 = vsub.s32 0, %v281
        %v283 = vrot.slane %v278, %v282
        %v284 = vlaneseq
        %v285 = vshrl.u32 %v284, 7
        %v286 = vsub.s32 1, %v285
        %v287 = vrot.slane %v278, %v286
        %v288 = vlaneseq
        %v289 = vshrl.u32 %v288, 7
        %v290 = vsub.s32 2, %v289
        %v291 = vrot.slane %v278, %v290
        %295 = vmatprep.subr.mxu0 %v276
        %296 = vmatpush1.msra.mxu0 %v275
        %297 = vmatprep.subr.mxu0 %v273
        %298 = vmatpush1.msra.mxu0 %v272
        %299 = vmatprep.subr.mxu0 %v270
        %300 = vmatpush1.msra.mxu0 %v269
        %301 = vmatprep.subr.mxu0 %v267
        %302 = vmatpush1.msra.mxu0 %v266
        %303 = vmatprep.subr.mxu0 %v264
        %304 = vmatpush1.msra.mxu0 %v263
        %305 = vmatprep.subr.mxu0 %v261
        %306 = vmatpush1.msra.mxu0 %v260
        %307 = vmatprep.subr.mxu0 %v258
        %308 = vmatpush1.msra.mxu0 %v257
        %309 = vmatprep.subr.mxu0 %v255
        %310 = vmatpush1.msra.mxu0 %v254
        %311 = vmatprep.subr.mxu0 %v252
        %312 = vmatpush1.msra.mxu0 %v251
        %313 = vmatprep.subr.mxu0 %v249
        %314 = vmatpush1.msra.mxu0 %v248
        %315 = vmatprep.subr.mxu0 %v246
        %316 = vmatpush1.msra.mxu0 %v245
        %317 = vmatprep.subr.mxu0 %v243
        %318 = vmatpush1.msra.mxu0 %v242
        %319 = vmatprep.subr.mxu0 %v240
        %320 = vmatpush1.msra.mxu0 %v239
        %321 = vmatprep.subr.mxu0 %v237
        %322 = vmatpush1.msra.mxu0 %v236
        %323 = vmatprep.subr.mxu0 %v234
        %324 = vmatpush1.msra.mxu0 %v233
        %325 = vmatprep.subr.mxu0 %v231
        %326 = vmatpush1.msra.mxu0 %v230
        %327 = vmatprep.subr.mxu0 0.0
        %328 = vmatpush2.msra.mxu0 0.0
        %329 = vmatprep.subr.mxu0 0.0
        %330 = vmatpush2.msra.mxu0 0.0
        %331 = vmatprep.subr.mxu0 0.0
        %332 = vmatpush2.msra.mxu0 0.0
        %333 = vmatprep.subr.mxu0 0.0
        %334 = vmatpush2.msra.mxu0 0.0
        %335 = vmatprep.subr.mxu0 0.0
        %336 = vmatpush2.msra.mxu0 0.0
        %337 = vmatprep.subr.mxu0 0.0
        %338 = vmatpush2.msra.mxu0 0.0
        %339 = vmatprep.subr.mxu0 0.0
        %340 = vmatpush2.msra.mxu0 0.0
        %341 = vmatprep.subr.mxu0 0.0
        %342 = vmatpush2.msra.mxu0 0.0
        %343 = vmatprep.subr.mxu0 0.0
        %344 = vmatpush2.msra.mxu0 0.0
        %345 = vmatprep.subr.mxu0 0.0
        %346 = vmatpush2.msra.mxu0 0.0
        %347 = vmatprep.subr.mxu0 0.0
        %348 = vmatpush2.msra.mxu0 0.0
        %349 = vmatprep.subr.mxu0 0.0
        %350 = vmatpush2.msra.mxu0 0.0
        %351 = vmatprep.subr.mxu0 0.0
        %352 = vmatpush2.msra.mxu0 0.0
        %353 = vmatprep.subr.mxu0 0.0
        %354 = vmatpush2.msra.mxu0 0.0
        %355 = vmatprep.subr.mxu0 0.0
        %356 = vmatpush2.msra.mxu0 0.0
        %357 = vmatprep.subr.mxu0 0.0
        %358 = vmatpush2.msra.mxu0 0.0
        %359 = vmatprep.mubr.f32.mxu0 0.0
        %360 = vmatmul.mubr.f32.gmra.mxu0 %v229
        %v361 = vpop.f32.mrf.mxu0
        %v362 = vadd.f32 %v283, %v361
        %v363 = vpop.f32.mrf.mxu0
        %v364 = vadd.f32 %v287, %v363
        %365 = vdwg.mxu0
        %366 = vmatprep.subr.mxu0 0.0
        %367 = vmatpush1.msra.mxu0 %v277
        %368 = vmatprep.subr.mxu0 0.0
        %369 = vmatpush1.msra.mxu0 %v274
        %370 = vmatprep.subr.mxu0 0.0
        %371 = vmatpush1.msra.mxu0 %v271
        %372 = vmatprep.subr.mxu0 0.0
        %373 = vmatpush1.msra.mxu0 %v268
        %374 = vmatprep.subr.mxu0 0.0
        %375 = vmatpush1.msra.mxu0 %v265
        %376 = vmatprep.subr.mxu0 0.0
        %377 = vmatpush1.msra.mxu0 %v262
        %378 = vmatprep.subr.mxu0 0.0
        %379 = vmatpush1.msra.mxu0 %v259
        %380 = vmatprep.subr.mxu0 0.0
        %381 = vmatpush1.msra.mxu0 %v256
        %382 = vmatprep.subr.mxu0 0.0
        %383 = vmatpush1.msra.mxu0 %v253
        %384 = vmatprep.subr.mxu0 0.0
        %385 = vmatpush1.msra.mxu0 %v250
        %386 = vmatprep.subr.mxu0 0.0
        %387 = vmatpush1.msra.mxu0 %v247
        %388 = vmatprep.subr.mxu0 0.0
        %389 = vmatpush1.msra.mxu0 %v244
        %390 = vmatprep.subr.mxu0 0.0
        %391 = vmatpush1.msra.mxu0 %v241
        %392 = vmatprep.subr.mxu0 0.0
        %393 = vmatpush1.msra.mxu0 %v238
        %394 = vmatprep.subr.mxu0 0.0
        %395 = vmatpush1.msra.mxu0 %v235
        %396 = vmatprep.subr.mxu0 0.0
        %397 = vmatpush1.msra.mxu0 %v232
        %398 = vmatprep.subr.mxu0 0.0
        %399 = vmatpush2.msra.mxu0 0.0
        %400 = vmatprep.subr.mxu0 0.0
        %401 = vmatpush2.msra.mxu0 0.0
        %402 = vmatprep.subr.mxu0 0.0
        %403 = vmatpush2.msra.mxu0 0.0
        %404 = vmatprep.subr.mxu0 0.0
        %405 = vmatpush2.msra.mxu0 0.0
        %406 = vmatprep.subr.mxu0 0.0
        %407 = vmatpush2.msra.mxu0 0.0
        %408 = vmatprep.subr.mxu0 0.0
        %409 = vmatpush2.msra.mxu0 0.0
        %410 = vmatprep.subr.mxu0 0.0
        %411 = vmatpush2.msra.mxu0 0.0
        %412 = vmatprep.subr.mxu0 0.0
        %413 = vmatpush2.msra.mxu0 0.0
        %414 = vmatprep.subr.mxu0 0.0
        %415 = vmatpush2.msra.mxu0 0.0
        %416 = vmatprep.subr.mxu0 0.0
        %417 = vmatpush2.msra.mxu0 0.0
        %418 = vmatprep.subr.mxu0 0.0
        %419 = vmatpush2.msra.mxu0 0.0
        %420 = vmatprep.subr.mxu0 0.0
        %421 = vmatpush2.msra.mxu0 0.0
        %422 = vmatprep.subr.mxu0 0.0
        %423 = vmatpush2.msra.mxu0 0.0
        %424 = vmatprep.subr.mxu0 0.0
        %425 = vmatpush2.msra.mxu0 0.0
        %426 = vmatprep.subr.mxu0 0.0
        %427 = vmatpush2.msra.mxu0 0.0
        %428 = vmatprep.subr.mxu0 0.0
        %429 = vmatpush2.msra.mxu0 0.0
        %430 = vmatprep.mubr.f32.mxu0 0.0
        %431 = vmatmul.mubr.f32.gmra.mxu0 %v229
        %v432 = vpop.f32.mrf.mxu0
        %v433 = vadd.f32 %v291, %v432
        %v434 = vpop.f32.mrf.mxu0
        %435 = vdwg.mxu0
        %436 = vmatprep.subr.mxu0 0.0
        %437 = vmatpush1.xpose.msra.mxu0 0.0
        %438 = vmatprep.subr.mxu0 0.0
        %439 = vmatpush1.xpose.msra.mxu0 0.0
        %440 = vmatprep.subr.mxu0 0.0
        %441 = vmatpush1.xpose.msra.mxu0 0.0
        %442 = vmatprep.subr.mxu0 0.0
        %443 = vmatpush1.xpose.msra.mxu0 0.0
        %444 = vmatprep.subr.mxu0 0.0
        %445 = vmatpush1.xpose.msra.mxu0 0.0
        %446 = vmatprep.subr.mxu0 0.0
        %447 = vmatpush1.xpose.msra.mxu0 0.0
        %448 = vmatprep.subr.mxu0 0.0
        %449 = vmatpush1.xpose.msra.mxu0 0.0
        %450 = vmatprep.subr.mxu0 0.0
        %451 = vmatpush1.xpose.msra.mxu0 0.0
        %452 = vmatprep.subr.mxu0 0.0
        %453 = vmatpush1.xpose.msra.mxu0 0.0
        %454 = vmatprep.subr.mxu0 0.0
        %455 = vmatpush1.xpose.msra.mxu0 0.0
        %456 = vmatprep.subr.mxu0 0.0
        %457 = vmatpush1.xpose.msra.mxu0 0.0
        %458 = vmatprep.subr.mxu0 0.0
        %459 = vmatpush1.xpose.msra.mxu0 0.0
        %460 = vmatprep.subr.mxu0 0.0
        %461 = vmatpush1.xpose.msra.mxu0 0.0
        %462 = vmatprep.subr.mxu0 0.0
        %463 = vmatpush1.xpose.msra.mxu0 0.0
        %464 = vmatprep.subr.mxu0 0.0
        %465 = vmatpush1.xpose.msra.mxu0 0.0
        %466 = vmatprep.subr.mxu0 0.0
        %467 = vmatpush1.xpose.msra.mxu0 %v364
        %468 = vmatprep.subr.mxu0 0.0
        %469 = vmatpush2.xpose.msra.mxu0 0.0
        %470 = vmatprep.subr.mxu0 0.0
        %471 = vmatpush2.xpose.msra.mxu0 0.0
        %472 = vmatprep.subr.mxu0 0.0
        %473 = vmatpush2.xpose.msra.mxu0 0.0
        %474 = vmatprep.subr.mxu0 0.0
        %475 = vmatpush2.xpose.msra.mxu0 0.0
        %476 = vmatprep.subr.mxu0 0.0
        %477 = vmatpush2.xpose.msra.mxu0 0.0
        %478 = vmatprep.subr.mxu0 0.0
        %479 = vmatpush2.xpose.msra.mxu0 0.0
        %480 = vmatprep.subr.mxu0 0.0
        %481 = vmatpush2.xpose.msra.mxu0 0.0
        %482 = vmatprep.subr.mxu0 0.0
        %483 = vmatpush2.xpose.msra.mxu0 0.0
        %484 = vmatprep.subr.mxu0 0.0
        %485 = vmatpush2.xpose.msra.mxu0 0.0
        %486 = vmatprep.subr.mxu0 0.0
        %487 = vmatpush2.xpose.msra.mxu0 0.0
        %488 = vmatprep.subr.mxu0 0.0
        %489 = vmatpush2.xpose.msra.mxu0 0.0
        %490 = vmatprep.subr.mxu0 0.0
        %491 = vmatpush2.xpose.msra.mxu0 0.0
        %492 = vmatprep.subr.mxu0 0.0
        %493 = vmatpush2.xpose.msra.mxu0 0.0
        %494 = vmatprep.subr.mxu0 0.0
        %495 = vmatpush2.xpose.msra.mxu0 0.0
        %496 = vmatprep.subr.mxu0 0.0
        %497 = vmatpush2.xpose.msra.mxu0 0.0
        %498 = vmatprep.subr.mxu0 0.0
        %499 = vmatpush2.xpose.msra.mxu0 0.0
        %500 = vmatprep.mubr.f32.mxu0 0.0
        %501 = vmatmul.mubr.f32.gmra.mxu0 %v362
        %v502 = vpop.f32.mrf.mxu0
        %v503 = vadd.f32 0.0, %v502
        %v504 = vpop.f32.mrf.mxu0
        %505 = vdwg.mxu0
        %vm506 = vcmask 64512
        %v507 = vsel %vm506, %v503, -inf
        %508 = vmax.xlane.f32.xlu0 %v507
        %v509 = vpop.xlane.xlu0 %508
        %v510 = vsub.f32 %v503, %v509
        %v511 = vmul.f32 %v510, 1.442695
        %v512 = vpow.pop %v511
        %v513 = vsel %vm506, %v512, 0.0
        %514 = vadd.xlane.f32.xlu0 %v513
        %v515 = vpop.xlane.xlu0 %514
        %v516 = vrcp.pop %v515
        %v517 = vmul.f32 %v512, %v516
        %v519 = vsel %vm506, %v517, 0
        %521 = vmatprep.subr.mxu0 0.0
        %522 = vmatpush1.msra.mxu0 0.0
        %523 = vmatprep.subr.mxu0 0.0
        %524 = vmatpush1.msra.mxu0 0.0
        %525 = vmatprep.subr.mxu0 0.0
        %526 = vmatpush1.msra.mxu0 0.0
        %527 = vmatprep.subr.mxu0 0.0
        %528 = vmatpush1.msra.mxu0 0.0
        %529 = vmatprep.subr.mxu0 0.0
        %530 = vmatpush1.msra.mxu0 0.0
        %531 = vmatprep.subr.mxu0 0.0
        %532 = vmatpush1.msra.mxu0 0.0
        %533 = vmatprep.subr.mxu0 0.0
        %534 = vmatpush1.msra.mxu0 0.0
        %535 = vmatprep.subr.mxu0 0.0
        %536 = vmatpush1.msra.mxu0 0.0
        %537 = vmatprep.subr.mxu0 0.0
        %538 = vmatpush1.msra.mxu0 0.0
        %539 = vmatprep.subr.mxu0 0.0
        %540 = vmatpush1.msra.mxu0 0.0
        %541 = vmatprep.subr.mxu0 0.0
        %542 = vmatpush1.msra.mxu0 0.0
        %543 = vmatprep.subr.mxu0 0.0
        %544 = vmatpush1.msra.mxu0 0.0
        %545 = vmatprep.subr.mxu0 0.0
        %546 = vmatpush1.msra.mxu0 0.0
        %547 = vmatprep.subr.mxu0 0.0
        %548 = vmatpush1.msra.mxu0 0.0
        %549 = vmatprep.subr.mxu0 0.0
        %550 = vmatpush1.msra.mxu0 0.0
        %551 = vmatprep.subr.mxu0 0.0
        %552 = vmatpush1.msra.mxu0 %v433
        %553 = vmatprep.subr.mxu0 0.0
        %554 = vmatpush2.msra.mxu0 0.0
        %555 = vmatprep.subr.mxu0 0.0
        %556 = vmatpush2.msra.mxu0 0.0
        %557 = vmatprep.subr.mxu0 0.0
        %558 = vmatpush2.msra.mxu0 0.0
        %559 = vmatprep.subr.mxu0 0.0
        %560 = vmatpush2.msra.mxu0 0.0
        %561 = vmatprep.subr.mxu0 0.0
        %562 = vmatpush2.msra.mxu0 0.0
        %563 = vmatprep.subr.mxu0 0.0
        %564 = vmatpush2.msra.mxu0 0.0
        %565 = vmatprep.subr.mxu0 0.0
        %566 = vmatpush2.msra.mxu0 0.0
        %567 = vmatprep.subr.mxu0 0.0
        %568 = vmatpush2.msra.mxu0 0.0
        %569 = vmatprep.subr.mxu0 0.0
        %570 = vmatpush2.msra.mxu0 0.0
        %571 = vmatprep.subr.mxu0 0.0
        %572 = vmatpush2.msra.mxu0 0.0
        %573 = vmatprep.subr.mxu0 0.0
        %574 = vmatpush2.msra.mxu0 0.0
        %575 = vmatprep.subr.mxu0 0.0
        %576 = vmatpush2.msra.mxu0 0.0
        %577 = vmatprep.subr.mxu0 0.0
        %578 = vmatpush2.msra.mxu0 0.0
        %579 = vmatprep.subr.mxu0 0.0
        %580 = vmatpush2.msra.mxu0 0.0
        %581 = vmatprep.subr.mxu0 0.0
        %582 = vmatpush2.msra.mxu0 0.0
        %583 = vmatprep.subr.mxu0 0.0
        %584 = vmatpush2.msra.mxu0 0.0
        %585 = vmatprep.mubr.f32.mxu0 0.0
        %586 = vmatmul.mubr.f32.gmra.mxu0 %v519
        %v587 = vpop.f32.mrf.mxu0
        %v588 = vadd.f32 0.0, %v587
        %v589 = vpop.f32.mrf.mxu0
        %590 = vdwg.mxu0
        %s591 = sld [smem:[#allocation2]]
        %v592 = vstv %s591
        %v593 = vmul.f32 %v592, %v588
        %v594 = vadd.f32 %v593, %v229
        %595 = vst [vmem:[%s228] sm:$0xff] %v594
        %s596 = sand.u32 %s120, 1
        %s597 = scalar_lea.sflag [#allocation5], %s596
        %s598 = sand.u32 %s120, 1
        %s599 = smul.addr %s598, 8
        %s600 = scalar_lea.vmem [#allocation8], %s599
        // Predicated region
        $region45: #{tpu_custom_call.1} parent=35 // pred_check
          %p601 = pneg %p130
        $region46: #{tpu_custom_call.1} parent=35 // pred_check_branch
          %603 = sbr.rel (%p601) target = $region48
        $region47: #{tpu_custom_call.1} parent=35 // pred_region
          %s605 = ssub.s32 128, 128
          %606 = vsyncadd %s597, %s605
          %s607 = smul.addr %s23, 128
          %s608 = scalar_lea.hbm %s4, %s607
          %s610 = sshll.u32 %s600, 4
          %s611 = int_to_ptr.vmem [resolvable:$true] %s610
          %613 = dma.vmem_to_hbm [thread:$0]  %s611, 128, %s608, %s597
        $region48: #{tpu_custom_call.1} parent=35 // pred_fallthru
          _
      $region36: #{tpu_custom_call.1} parent=5 // pred_fallthru
        _
      %p614 = scmp.le.s32.totalorder 2, %s18
      // Predicated region
      $region49: #{tpu_custom_call.1} parent=5 // pred_check
        %p615 = pneg %p614
      $region50: #{tpu_custom_call.1} parent=5 // pred_check_branch
        %617 = sbr.rel (%p615) target = $region52
      $region51: #{tpu_custom_call.1} parent=5 // pred_region
        %s618 = ssub.s32 %s18, 2
        // Predicated region
        $region53: #{tpu_custom_call.1} parent=51 // pred_check
          %p619 = pneg %p136
        $region54: #{tpu_custom_call.1} parent=51 // pred_check_branch
          %621 = sbr.rel (%p619) target = $region56
        $region55: #{tpu_custom_call.1} parent=51 // pred_region
          %s622 = sand.u32 %s121, 1
          %s623 = scalar_lea.sflag [#allocation5], %s622
          %s624 = sand.u32 %s121, 1
          %s625 = smul.addr %s624, 8
          %s626 = scalar_lea.vmem [#allocation8], %s625
          %627 = dma.done %s623, 128
        $region56: #{tpu_custom_call.1} parent=51 // pred_fallthru
          _
      $region52: #{tpu_custom_call.1} parent=5 // pred_fallthru
        _
    $region6: #{tpu_custom_call.1} parent=1 // loop_footer
      %s22 = sadd.s32 1, %s18
    $region7: #{tpu_custom_call.1} parent=1 // loop_footer_branch
      %17 = sbr.rel target = $region3
    $region8: #{tpu_custom_call.1} parent=1 // loop_exit
      _
    %628 = vsyncpa [#allocation4], 1
    %s629 = scalar_lea.sflag [#allocation4], 1
    %630 = vsyncpa %s629, 1
    %631 = vsyncpa [#allocation7], 1
    %632 = vsyncpa [#allocation5], 1
    %s633 = scalar_lea.sflag [#allocation5], 1
    %634 = vsyncpa %s633, 1

</llo_original>
